<compile_context>
chip_gen: v7x
topology: tpu7x:2x2x1
jax: 0.10.0
libtpu: 0.0.40
codegen_flags: <defaults>
</compile_context>

<pallas_src>
import functools
import math

import jax
import jax.numpy as jnp
from jax.experimental import pallas as pl
from jax.experimental.pallas import tpu as pltpu


def _round_up(x, m):
    return ((x + m - 1) // m) * m


# ----------------------------- kernels --------------------------------------

def _linear_kernel_single_k(x_ref, w_ref, b_ref, o_ref):
    # Whole contraction in one grid step: no accumulator, no init/finalize.
    # x_ref: [tm, K]  w_ref: [K, tn]  b_ref: [1, tn]  o_ref: [tm, tn]
    acc = jnp.dot(x_ref[...], w_ref[...], preferred_element_type=jnp.float32)
    o_ref[...] = (acc + b_ref[...]).astype(o_ref.dtype)


def _linear_kernel_multi_k(x_ref, w_ref, b_ref, o_ref, acc_ref):
    # x_ref: [tm, tk]  w_ref: [tk, tn]  b_ref: [1, tn]  o/acc_ref: [tm, tn]
    k = pl.program_id(2)

    @pl.when(k == 0)
    def _():
        acc_ref[...] = jnp.zeros_like(acc_ref)

    acc_ref[...] += jnp.dot(x_ref[...], w_ref[...],
                            preferred_element_type=jnp.float32)

    @pl.when(k == pl.num_programs(2) - 1)
    def _():
        o_ref[...] = (acc_ref[...] + b_ref[...]).astype(o_ref.dtype)


# ----------------------------- host wrappers --------------------------------

def prepare_simple_linear(weight, bias, *, tn=512, tk=1024,
                          operand_dtype=jnp.bfloat16):
    """One-time weight/bias prep (call once, NOT per forward).

    weight: [out_features, in_features] (PyTorch layout)
    bias:   [out_features] or None
    Returns (weight_kn, bias_2d, meta):
      weight_kn: [k_pad, n_pad] operand_dtype, transposed to [IN, OUT] and
                 zero-padded to tile multiples (MXU-native rhs layout).
      bias_2d:   [1, n_pad] float32, zero-padded.
    """
    out_features, in_features = weight.shape
    tn = min(tn, _round_up(out_features, 128))
    tk = min(tk, _round_up(in_features, 128))
    n_pad = _round_up(out_features, tn)
    k_pad = _round_up(in_features, tk)

    w_kn = jnp.pad(weight.T.astype(operand_dtype),
                   ((0, k_pad - in_features), (0, n_pad - out_features)))
    b = (jnp.zeros((out_features,), jnp.float32) if bias is None
         else bias.astype(jnp.float32))
    b_2d = jnp.pad(b, (0, n_pad - out_features)).reshape(1, n_pad)

    meta = dict(in_features=in_features, out_features=out_features,
                tn=tn, tk=tk, operand_dtype=operand_dtype)
    return w_kn, b_2d, meta


@functools.partial(
    jax.jit,
    static_argnames=("out_features", "tm", "tn", "tk", "operand_dtype"))
def simple_linear_forward(x, weight_kn, bias_2d, *, out_features,
                          tm=512, tn=512, tk=1024,
                          operand_dtype=jnp.bfloat16):
    """Pallas equivalent of SimpleLinear.forward (y = x @ W^T + b).

    x:         [batch, in_features]
    weight_kn: [k_pad, n_pad]  from prepare_simple_linear (same tn/tk defaults)
    bias_2d:   [1, n_pad]      float32
    returns {'logits': [batch, out_features]} in x.dtype
    """
    batch, in_features = x.shape
    k_pad, n_pad = weight_kn.shape
    out_dtype = x.dtype

    # Lane/sublane-aligned tiles; tm covers the whole padded batch in the
    # inference regime so the weight streams through HBM exactly once.
    tm = min(tm, _round_up(batch, 8))
    tn = min(tn, n_pad)
    tk = min(tk, k_pad)
    m_pad = _round_up(batch, tm)

    grid_m = m_pad // tm
    grid_n = n_pad // tn
    grid_k = k_pad // tk

    # v7x megacore: keep >=2 blocks on a parallel axis when possible.
    if grid_m == 1 and grid_n == 1 and n_pad % 256 == 0:
        tn = n_pad // 2
        grid_n = 2

    # Per-call work on x only: pad to tile multiples and cast to MXU dtype.
    x_p = x
    if (m_pad, k_pad) != (batch, in_features):
        x_p = jnp.pad(x, ((0, m_pad - batch), (0, k_pad - in_features)))
    x_p = x_p.astype(operand_dtype)

    op_isz = jnp.dtype(operand_dtype).itemsize
    out_isz = jnp.dtype(out_dtype).itemsize
    cost = pl.CostEstimate(
        flops=2 * m_pad * k_pad * n_pad,
        transcendentals=0,
        bytes_accessed=int(x_p.size * op_isz * grid_n          # x re-streamed per N block
                           + weight_kn.size * op_isz * grid_m  # w re-streamed per M block
                           + bias_2d.size * 4
                           + m_pad * n_pad * out_isz))

    vmem_est = (2 * (tm * tk + tk * tn) * op_isz   # double-buffered x / w tiles
                + 2 * tm * tn * out_isz            # double-buffered out tile
                + tm * tn * 4                      # f32 accumulator
                + 2 * tn * 4)                      # bias tile
    vmem_limit = int(min(max(2 * vmem_est, 32 * 1024 * 1024), 48 * 1024 * 1024))

    if grid_k == 1:
        out_padded = pl.pallas_call(
            _linear_kernel_single_k,
            out_shape=jax.ShapeDtypeStruct((m_pad, n_pad), out_dtype),
            grid_spec=pltpu.PrefetchScalarGridSpec(
                num_scalar_prefetch=0,
                grid=(grid_m, grid_n),
                in_specs=[
                    pl.BlockSpec((tm, tk), lambda i, j: (i, 0)),   # x
                    pl.BlockSpec((tk, tn), lambda i, j: (0, j)),   # weight [K, N]
                    pl.BlockSpec((1, tn), lambda i, j: (0, j)),    # bias
                ],
                out_specs=pl.BlockSpec((tm, tn), lambda i, j: (i, j)),
            ),
            compiler_params=pltpu.CompilerParams(
                dimension_semantics=("parallel", "parallel"),
                vmem_limit_bytes=vmem_limit),
            cost_estimate=cost,
        )(x_p, weight_kn, bias_2d)
    else:
        out_padded = pl.pallas_call(
            _linear_kernel_multi_k,
            out_shape=jax.ShapeDtypeStruct((m_pad, n_pad), out_dtype),
            grid_spec=pltpu.PrefetchScalarGridSpec(
                num_scalar_prefetch=0,
                grid=(grid_m, grid_n, grid_k),
                in_specs=[
                    pl.BlockSpec((tm, tk), lambda i, j, k: (i, k)),  # x
                    pl.BlockSpec((tk, tn), lambda i, j, k: (k, j)),  # weight [K, N]
                    pl.BlockSpec((1, tn), lambda i, j, k: (0, j)),   # bias
                ],
                out_specs=pl.BlockSpec((tm, tn), lambda i, j, k: (i, j)),
                scratch_shapes=[pltpu.VMEM((tm, tn), jnp.float32)],
            ),
            compiler_params=pltpu.CompilerParams(
                dimension_semantics=("parallel", "parallel", "arbitrary"),
                vmem_limit_bytes=vmem_limit),
            cost_estimate=cost,
        )(x_p, weight_kn, bias_2d)

    return {'logits': out_padded[:batch, :out_features]}


def init_simple_linear_params(key, in_features, out_features):
    """SimpleLinear.reset_parameters():
    kaiming_uniform_(weight, nonlinearity='linear') -> U(-b, b), b = sqrt(3/fan_in)
    constant_(bias, 0)
    """
    bound = math.sqrt(3.0 / in_features)
    weight = jax.random.uniform(
        key, (out_features, in_features), dtype=jnp.float32,
        minval=-bound, maxval=bound)
    bias = jnp.zeros((out_features,), dtype=jnp.float32)
    return weight, bias


if __name__ == "__main__":
    key = jax.random.PRNGKey(0)
    k_w, k_x = jax.random.split(key)

    batch, in_features, out_features = 8, 32, 16

    weight, bias = init_simple_linear_params(k_w, in_features, out_features)
    x = jax.random.normal(k_x, (batch, in_features), dtype=jnp.float32)

    # One-time parameter prep (transpose to [IN, OUT], pad, cast to bf16).
    w_kn, b_2d, meta = prepare_simple_linear(weight, bias)

    out = simple_linear_forward(x, w_kn, b_2d,
                                out_features=meta["out_features"])
    logits = jax.block_until_ready(out['logits'])

    # Reference checks. The kernel uses bf16 MXU operands with f32
    # accumulation (deliberate precision choice, per review sign-off), so
    # compare tightly against a bf16-rounded-operand reference and loosely
    # against the pure-f32 reference.
    x_bf = x.astype(jnp.bfloat16).astype(jnp.float32)
    w_bf = weight.astype(jnp.bfloat16).astype(jnp.float32)
    ref_bf16 = x_bf @ w_bf.T + bias
    ref_f32 = x @ weight.T + bias

    assert logits.shape == (batch, out_features)
    assert jnp.allclose(logits, ref_bf16, atol=1e-3, rtol=1e-3)
    assert jnp.allclose(logits, ref_f32, atol=5e-2, rtol=5e-2)

    print("KERNEL_OK")
</pallas_src>

<mosaic_0001>
module attributes {stable_mosaic.version = 11 : i64} {
  func.func @_linear_kernel_single_k(%arg0: i32, %arg1: i32, %arg2: memref<8x128xbf16, #tpu.memory_space<vmem>>, %arg3: memref<128x128xbf16, #tpu.memory_space<vmem>>, %arg4: memref<1x128xf32, #tpu.memory_space<vmem>>, %arg5: memref<8x128xf32, #tpu.memory_space<vmem>>) attributes {dimension_semantics = [#tpu.dimension_semantics<parallel>, #tpu.dimension_semantics<parallel>], iteration_bounds = array<i64: 1, 1>, scalar_prefetch = 0 : i64, scratch_operands = 0 : i64, tpu.core_type = #tpu.core_type<tc>, window_params = [{transform_indices = @transform_0, window_bounds = array<i64: 8, 128>}, {transform_indices = @transform_1, window_bounds = array<i64: 128, 128>}, {transform_indices = @transform_2, window_bounds = array<i64: 1, 128>}, {transform_indices = @transform_3, window_bounds = array<i64: 8, 128>}]} {
    %c0 = arith.constant 0 : index
    %c0_0 = arith.constant 0 : index
    %0 = vector.load %arg2[%c0, %c0_0] : memref<8x128xbf16, #tpu.memory_space<vmem>>, vector<8x128xbf16>
    %c0_1 = arith.constant 0 : index
    %c0_2 = arith.constant 0 : index
    %1 = vector.load %arg3[%c0_1, %c0_2] : memref<128x128xbf16, #tpu.memory_space<vmem>>, vector<128x128xbf16>
    %cst = arith.constant dense<0.000000e+00> : vector<8x128xf32>
    %2 = tpu.matmul %0, %1, %cst {dimension_numbers = #tpu.dot_dimension_numbers<[1], [0], [0], [1], [0, 0, 1, 1], [], []>} : vector<8x128xbf16>, vector<128x128xbf16>, vector<8x128xf32> -> vector<8x128xf32>
    %c0_3 = arith.constant 0 : index
    %c0_4 = arith.constant 0 : index
    %3 = vector.load %arg4[%c0_3, %c0_4] : memref<1x128xf32, #tpu.memory_space<vmem>>, vector<1x128xf32>
    %4 = vector.broadcast %3 : vector<1x128xf32> to vector<8x128xf32>
    %5 = arith.addf %2, %4 : vector<8x128xf32>
    %c0_5 = arith.constant 0 : index
    %c0_6 = arith.constant 0 : index
    %6 = vector.load %arg5[%c0_5, %c0_6] : memref<8x128xf32, #tpu.memory_space<vmem>>, vector<8x128xf32>
    tpu.vector_store %arg5[%c0_5, %c0_6], %5 {strides = array<i32>} : memref<8x128xf32, #tpu.memory_space<vmem>>, vector<8x128xf32>,
    return
  }
  func.func @transform_0(%arg0: i32, %arg1: i32) -> (i32, i32) {
    %c0_i32 = arith.constant 0 : i32
    %c0_i32_0 = arith.constant 0 : i32
    return %arg0, %c0_i32 : i32, i32
  }
  func.func @transform_1(%arg0: i32, %arg1: i32) -> (i32, i32) {
    %c0_i32 = arith.constant 0 : i32
    %c0_i32_0 = arith.constant 0 : i32
    return %c0_i32, %arg1 : i32, i32
  }
  func.func @transform_2(%arg0: i32, %arg1: i32) -> (i32, i32) {
    %c0_i32 = arith.constant 0 : i32
    %c0_i32_0 = arith.constant 0 : i32
    return %c0_i32, %arg1 : i32, i32
  }
  func.func @transform_3(%arg0: i32, %arg1: i32) -> (i32, i32) {
    %c0_i32 = arith.constant 0 : i32
    return %arg0, %arg1 : i32, i32
  }
}

</mosaic_0001>

<llo_original>
// kernel: simple_linear_forward.1
$region0: #{simple_linear_forward.1}
  #allocation0 [shape = 'u32[]', space=smem, size = 0x4, offset = 0x4, fixed_abs, tag = 'smem constant byte address 0x4 - core index']
  #allocation1 [shape = 'u32[144,128]{1,0:T(1,128)}', space=vmem, size = 0x12000, scoped, tag = 'internal scratch']
  %s0 = inlined_call_operand.vmem [shape: bf16[8,128], index: 0, kind: input, shape index: {}]
  %s1 = inlined_call_operand.hbm [shape: bf16[128,128], index: 1, kind: input, shape index: {}]
  %s2 = inlined_call_operand.vmem [shape: f32[1,128], index: 2, kind: input, shape index: {}]
  %s3 = inlined_call_operand.hbm [shape: f32[8,128], index: 3, kind: output, shape index: {}]
  %s4 = sld [smem:[#allocation0]]
  $region26: #{simple_linear_forward.1} parent=0
    _
  %s6 = ssub.s32 1, %s4
  %s7 = scalar_select 0, %s6, %s4
  $region1: #{simple_linear_forward.1} parent=0
    #allocation2 [shape = 'u8[32768]{0}', space=vmem, size = 0x8000, scoped, tag = 'input window, operand 1, single buffered']
    #allocation3 [shape = 's32[1]{0}', space=sflag, size = 0x4, scoped, tag = 'scoped memory for simple_linear_forward.1']
    #allocation4 [shape = 's32[1]{0}', space=sflag, size = 0x4, scoped, tag = 'scoped memory for simple_linear_forward.1']
    #allocation5 [shape = 'u8[4096]{0}', space=vmem, size = 0x1000, scoped, tag = 'output window, operand 0, single buffered']
    %8 = vsyncpa [#allocation3], 0
    %9 = vsyncpa [#allocation4], 0
    // Predicated region
    $region2: #{simple_linear_forward.1} parent=1 // pred_check
      _
    $region3: #{simple_linear_forward.1} parent=1 // pred_check_branch
      %11 = sbr.rel (0) target = $region5
    $region4: #{simple_linear_forward.1} parent=1 // pred_region
      _
    $region5: #{simple_linear_forward.1} parent=1 // pred_fallthru
      _
    // Predicated region
    $region6: #{simple_linear_forward.1} parent=1 // pred_check
      _
    $region7: #{simple_linear_forward.1} parent=1 // pred_check_branch
      %13 = sbr.rel (0) target = $region9
    $region8: #{simple_linear_forward.1} parent=1 // pred_region
      %s15 = ssub.s32 1024, 1024
      %16 = vsyncadd [#allocation3], %s15
      %s17 = sshll.u32 [#allocation2], 4
      %s18 = int_to_ptr.vmem [resolvable:$true] %s17
      %23 = dma.hbm_to_vmem [thread:$0]  %s1, 1024, %s18, [#allocation3], 64, 64, 4
    $region9: #{simple_linear_forward.1} parent=1 // pred_fallthru
      _
    // Predicated region
    $region10: #{simple_linear_forward.1} parent=1 // pred_check
      _
    $region11: #{simple_linear_forward.1} parent=1 // pred_check_branch
      %25 = sbr.rel (0) target = $region13
    $region12: #{simple_linear_forward.1} parent=1 // pred_region
      _
    $region13: #{simple_linear_forward.1} parent=1 // pred_fallthru
      _
    // Predicated region
    $region14: #{simple_linear_forward.1} parent=1 // pred_check
      _
    $region15: #{simple_linear_forward.1} parent=1 // pred_check_branch
      %27 = sbr.rel (0) target = $region17
    $region16: #{simple_linear_forward.1} parent=1 // pred_region
      %28 = dma.done [#allocation3], 1024
    $region17: #{simple_linear_forward.1} parent=1 // pred_fallthru
      _
    %v30 = vld [vmem:[%s0] sm:$0xf]
    %v31 = vld [vmem:[#allocation2] sm:$0xf]
    %v32 = vld [vmem:[#allocation2 + $0x4] sm:$0xf]
    %v33 = vld [vmem:[#allocation2 + $0x8] sm:$0xf]
    %v34 = vld [vmem:[#allocation2 + $0xc] sm:$0xf]
    %v35 = vld [vmem:[#allocation2 + $0x10] sm:$0xf]
    %v36 = vld [vmem:[#allocation2 + $0x14] sm:$0xf]
    %v37 = vld [vmem:[#allocation2 + $0x18] sm:$0xf]
    %v38 = vld [vmem:[#allocation2 + $0x1c] sm:$0xf]
    %v39 = vld [vmem:[#allocation2 + $0x20] sm:$0xf]
    %v40 = vld [vmem:[#allocation2 + $0x24] sm:$0xf]
    %v41 = vld [vmem:[#allocation2 + $0x28] sm:$0xf]
    %v42 = vld [vmem:[#allocation2 + $0x2c] sm:$0xf]
    %v43 = vld [vmem:[#allocation2 + $0x30] sm:$0xf]
    %v44 = vld [vmem:[#allocation2 + $0x34] sm:$0xf]
    %v45 = vld [vmem:[#allocation2 + $0x38] sm:$0xf]
    %v46 = vld [vmem:[#allocation2 + $0x3c] sm:$0xf]
    %v47 = vld [vmem:[%s2] sm:$0x1]
    %v49 = vlaneseq
    %v50 = vshrl.u32 %v49, 7
    %v51 = vsub.s32 0, %v50
    %v52 = vrot.slane %v47, %v51
    %v70 = vunpack.c.l.b16 %v31
    %v71 = vunpack.c.l.b16 %v32
    %v72 = vunpack.c.l.b16 %v33
    %v73 = vunpack.c.l.b16 %v34
    %v74 = vunpack.c.l.b16 %v35
    %v75 = vunpack.c.l.b16 %v36
    %v76 = vunpack.c.l.b16 %v37
    %v77 = vunpack.c.l.b16 %v38
    %v78 = vunpack.c.l.b16 %v39
    %v79 = vunpack.c.l.b16 %v40
    %v80 = vunpack.c.l.b16 %v41
    %v81 = vunpack.c.l.b16 %v42
    %v82 = vunpack.c.l.b16 %v43
    %v83 = vunpack.c.l.b16 %v44
    %v84 = vunpack.c.l.b16 %v45
    %v85 = vunpack.c.l.b16 %v46
    %v86 = vpack.c.b16 %v71, %v70
    %v87 = vpack.c.b16 %v73, %v72
    %v88 = vpack.c.b16 %v75, %v74
    %v89 = vpack.c.b16 %v77, %v76
    %v90 = vpack.c.b16 %v79, %v78
    %v91 = vpack.c.b16 %v81, %v80
    %v92 = vpack.c.b16 %v83, %v82
    %v93 = vpack.c.b16 %v85, %v84
    %102 = vmatprep.subr.bf16.mxu0 0
    %103 = vmatpush1.bf16.msra.mxu0 %v86
    %104 = vmatprep.subr.bf16.mxu0 0
    %105 = vmatpush1.bf16.msra.mxu0 %v87
    %106 = vmatprep.subr.bf16.mxu0 0
    %107 = vmatpush1.bf16.msra.mxu0 %v88
    %108 = vmatprep.subr.bf16.mxu0 0
    %109 = vmatpush1.bf16.msra.mxu0 %v89
    %110 = vmatprep.subr.bf16.mxu0 0
    %111 = vmatpush1.bf16.msra.mxu0 %v90
    %112 = vmatprep.subr.bf16.mxu0 0
    %113 = vmatpush1.bf16.msra.mxu0 %v91
    %114 = vmatprep.subr.bf16.mxu0 0
    %115 = vmatpush1.bf16.msra.mxu0 %v92
    %116 = vmatprep.subr.bf16.mxu0 0
    %117 = vmatpush1.bf16.msra.mxu0 %v93
    %118 = vmatprep.subr.bf16.mxu0 0
    %119 = vmatpush1.bf16.msra.mxu0 0
    %120 = vmatprep.subr.bf16.mxu0 0
    %121 = vmatpush1.bf16.msra.mxu0 0
    %122 = vmatprep.subr.bf16.mxu0 0
    %123 = vmatpush1.bf16.msra.mxu0 0
    %124 = vmatprep.subr.bf16.mxu0 0
    %125 = vmatpush1.bf16.msra.mxu0 0
    %126 = vmatprep.subr.bf16.mxu0 0
    %127 = vmatpush1.bf16.msra.mxu0 0
    %128 = vmatprep.subr.bf16.mxu0 0
    %129 = vmatpush1.bf16.msra.mxu0 0
    %130 = vmatprep.subr.bf16.mxu0 0
    %131 = vmatpush1.bf16.msra.mxu0 0
    %132 = vmatprep.subr.bf16.mxu0 0
    %133 = vmatpush1.bf16.msra.mxu0 0
    %134 = vmatprep.mubr.bf16.mxu0 0
    %135 = vmatmul.mubr.bf16.gmra.mrb[0].mxu0 %v30
    %v136 = vpop.f32.mrb[0].mxu0
    %v137 = vadd.f32 %v52, %v136
    %v138 = vpop.f32.mrb[0].mxu0
    %v139 = vpop.f32.mrb[0].mxu0
    %v140 = vpop.f32.mrb[0].mxu0
    %141 = vdwg.mxu0
    %142 = vst [vmem:[#allocation5] sm:$0xff] %v137
    // Predicated region
    $region18: #{simple_linear_forward.1} parent=1 // pred_check
      _
    $region19: #{simple_linear_forward.1} parent=1 // pred_check_branch
      %144 = sbr.rel (0) target = $region21
    $region20: #{simple_linear_forward.1} parent=1 // pred_region
      %s146 = ssub.s32 128, 128
      %147 = vsyncadd [#allocation4], %s146
      %s149 = sshll.u32 [#allocation5], 4
      %s150 = int_to_ptr.vmem [resolvable:$true] %s149
      %152 = dma.vmem_to_hbm [thread:$0]  %s150, 128, %s3, [#allocation4]
    $region21: #{simple_linear_forward.1} parent=1 // pred_fallthru
      _
    // Predicated region
    $region22: #{simple_linear_forward.1} parent=1 // pred_check
      _
    $region23: #{simple_linear_forward.1} parent=1 // pred_check_branch
      %154 = sbr.rel (0) target = $region25
    $region24: #{simple_linear_forward.1} parent=1 // pred_region
      %155 = dma.done [#allocation4], 128
    $region25: #{simple_linear_forward.1} parent=1 // pred_fallthru
      _
    %156 = vsyncpa [#allocation3], 1
    %157 = vsyncpa [#allocation4], 1

</llo_original>
